<compile_context>
chip_gen: v7x
topology: tpu7x:2x2x1
jax: 0.10.0
libtpu: 0.0.40
codegen_flags: <defaults>
</compile_context>

<pallas_src>
import functools
import math

import jax
import jax.numpy as jnp
from jax.experimental import pallas as pl
from jax.experimental.pallas import tpu as pltpu

_MAX_LANES_PER_STEP = 4096  # working set is KBs; big single tiles beat tiny grids


def _round_up(x, m):
    return ((x + m - 1) // m) * m


def _mlp_kernel(xT_ref, w1_ref, b1_ref, w2_ref, b2_ref, w3_ref, b3_ref,
                w4_ref, b4_ref, o_ref, *, vpu_out):
    # Feature-major: activations are (features, batch_tile); batch on lanes.
    xT = xT_ref[...]                                             # (nInput=1, Bt)

    # Layer 1 (K = nInput = 1): VPU broadcast multiply-add, skip the MXU.
    h = jnp.maximum(w1_ref[...] * xT + b1_ref[...], 0.0)         # (H, Bt)

    # Layers 2 & 3: (H, H) @ (H, Bt) on the MXU, f32 accumulate.
    h = jnp.maximum(
        jnp.dot(w2_ref[...], h, preferred_element_type=jnp.float32) + b2_ref[...],
        0.0)
    h = jnp.maximum(
        jnp.dot(w3_ref[...], h, preferred_element_type=jnp.float32) + b3_ref[...],
        0.0)

    if vpu_out:
        # Layer 4 with nOutput == 1: VPU multiply by the broadcast w4 column,
        # then a sublane (XLU) reduction over the H rows.  Avoids a third MXU
        # round trip in the dependent chain (MRF latency on v5e/v6e).
        o = jnp.sum(w4_ref[...] * h, axis=0, keepdims=True) + b4_ref[...]
    else:
        # General nOutput: (nOutput, H) @ (H, Bt) on the MXU.
        o = jnp.dot(w4_ref[...], h, preferred_element_type=jnp.float32) + b4_ref[...]
    o_ref[...] = o.astype(o_ref.dtype)


def _pad2(a, r, c):
    out = jnp.zeros((r, c), jnp.float32)
    return out.at[:a.shape[0], :a.shape[1]].set(a.astype(jnp.float32))


def make_mlp_forward(params):
    """Build a jitted forward for MLPexplicit.

    params: [(W, b), ...] PyTorch-style; W is (out_features, in_features),
            b is (out_features,).
    Returns forward(x) where x is (B, nInput) f32 and the result is
    (B, nOutput) f32, matching MLPexplicit.forward.
    """
    (w1, b1), (w2, b2), (w3, b3), (w4, b4) = params
    n_in = w1.shape[1]
    n_hidden = w1.shape[0]
    n_out = w4.shape[0]
    H = max(_round_up(n_hidden, 8), 8)        # hidden padded to a sublane multiple
    vpu_out = (n_out == 1)

    # ---- one-time parameter padding / transposition (hoisted out of the call path)
    w1p = _pad2(w1, H, n_in);  b1p = _pad2(b1[:, None], H, 1)
    w2p = _pad2(w2, H, H);     b2p = _pad2(b2[:, None], H, 1)
    w3p = _pad2(w3, H, H);     b3p = _pad2(b3[:, None], H, 1)
    if vpu_out:
        w4p = _pad2(w4.T, H, 1)               # (H, 1): broadcast column for the VPU path
    else:
        w4p = _pad2(w4, n_out, H)             # (nOutput, H): MXU path
    b4p = _pad2(b4[:, None], n_out, 1)

    kernel = functools.partial(_mlp_kernel, vpu_out=vpu_out)

    @jax.jit
    def forward(x):
        B = x.shape[0]

        # ---- batch (lane) tiling: as few grid steps as possible -------------
        B128 = _round_up(B, 128)
        num_steps = pl.cdiv(B128, _MAX_LANES_PER_STEP)   # 1 for B <= 4096
        block_b = _round_up(-(-B128 // num_steps), 128)
        B_pad = block_b * num_steps

        # x -> feature-major, zero-padded on the lane axis (fuses under jit).
        xT = jnp.zeros((n_in, B_pad), jnp.float32).at[:, :B].set(
            x.astype(jnp.float32).T)

        def rep(a):
            # full-array block, identical for every grid step (weights / biases)
            return pl.BlockSpec(a.shape, lambda i: (0, 0))

        grid_spec = pltpu.PrefetchScalarGridSpec(
            num_scalar_prefetch=0,
            grid=(num_steps,),
            in_specs=[
                pl.BlockSpec((n_in, block_b), lambda i: (0, i)),  # x tile, batch on lanes
                rep(w1p), rep(b1p),
                rep(w2p), rep(b2p),
                rep(w3p), rep(b3p),
                rep(w4p), rep(b4p),
            ],
            out_specs=pl.BlockSpec((n_out, block_b), lambda i: (0, i)),
        )

        flops = 2 * B_pad * (H * n_in + H * H + H * H + n_out * H)
        bytes_accessed = 4 * (n_in * B_pad + n_out * B_pad
                              + H * n_in + H + 2 * (H * H + H) + n_out * H + n_out)

        outT = pl.pallas_call(
            kernel,
            out_shape=jax.ShapeDtypeStruct((n_out, B_pad), jnp.float32),
            grid_spec=grid_spec,
            compiler_params=pltpu.CompilerParams(
                dimension_semantics=("parallel",)),   # multi-step grids feed both v7x TCs
            cost_estimate=pl.CostEstimate(
                flops=flops, transcendentals=0, bytes_accessed=bytes_accessed),
        )(xT, w1p, b1p, w2p, b2p, w3p, b3p, w4p, b4p)

        # back to PyTorch layout, drop batch padding (fuses under jit)
        return outT[:, :B].T

    return forward


def init_linear(key, fan_in, fan_out):
    """PyTorch-style nn.Linear init: U(-1/sqrt(fan_in), 1/sqrt(fan_in)); W is (out, in)."""
    kw, kb = jax.random.split(key)
    bound = 1.0 / math.sqrt(fan_in)
    w = jax.random.uniform(kw, (fan_out, fan_in), jnp.float32, -bound, bound)
    b = jax.random.uniform(kb, (fan_out,), jnp.float32, -bound, bound)
    return w, b


def reference_forward(x, params):
    (w1, b1), (w2, b2), (w3, b3), (w4, b4) = params
    h = jnp.maximum(x @ w1.T + b1, 0.0)
    h = jnp.maximum(h @ w2.T + b2, 0.0)
    h = jnp.maximum(h @ w3.T + b3, 0.0)
    return h @ w4.T + b4


if __name__ == "__main__":
    nInput, nHidden, nOutput = 1, 10, 1
    batch = 8  # small deterministic slice of the original linspace workload

    key = jax.random.PRNGKey(0)
    k1, k2, k3, k4 = jax.random.split(key, 4)

    params = [
        init_linear(k1, nInput, nHidden),
        init_linear(k2, nHidden, nHidden),
        init_linear(k3, nHidden, nHidden),
        init_linear(k4, nHidden, nOutput),
    ]

    # deterministic inputs matching the original script's x = np.linspace(-5, 5, ...)
    x = jnp.linspace(-5.0, 5.0, batch, dtype=jnp.float32).reshape(batch, nInput)

    forward = make_mlp_forward(params)   # pads/caches params once, jits the call path
    out = jax.block_until_ready(forward(x))

    ref = reference_forward(x, params)
    assert out.shape == (batch, nOutput)
    assert jnp.allclose(out, ref, atol=1e-4, rtol=1e-4), "mismatch vs pure-JAX reference"

    print("KERNEL_OK")
</pallas_src>

<mosaic_0001>
module attributes {stable_mosaic.version = 11 : i64} {
  func.func @_mlp_kernel(%arg0: i32, %arg1: memref<1x128xf32, #tpu.memory_space<vmem>>, %arg2: memref<16x1xf32, #tpu.memory_space<vmem>>, %arg3: memref<16x1xf32, #tpu.memory_space<vmem>>, %arg4: memref<16x16xf32, #tpu.memory_space<vmem>>, %arg5: memref<16x1xf32, #tpu.memory_space<vmem>>, %arg6: memref<16x16xf32, #tpu.memory_space<vmem>>, %arg7: memref<16x1xf32, #tpu.memory_space<vmem>>, %arg8: memref<16x1xf32, #tpu.memory_space<vmem>>, %arg9: memref<1x1xf32, #tpu.memory_space<vmem>>, %arg10: memref<1x128xf32, #tpu.memory_space<vmem>>) attributes {dimension_semantics = [#tpu.dimension_semantics<parallel>], iteration_bounds = array<i64: 1>, scalar_prefetch = 0 : i64, scratch_operands = 0 : i64, tpu.core_type = #tpu.core_type<tc>, window_params = [{transform_indices = @transform_0, window_bounds = array<i64: 1, 128>}, {pipeline_mode = #tpu.pipeline_mode<synchronous>, transform_indices = @transform_1, window_bounds = array<i64: 16, 1>}, {pipeline_mode = #tpu.pipeline_mode<synchronous>, transform_indices = @transform_2, window_bounds = array<i64: 16, 1>}, {pipeline_mode = #tpu.pipeline_mode<synchronous>, transform_indices = @transform_3, window_bounds = array<i64: 16, 16>}, {pipeline_mode = #tpu.pipeline_mode<synchronous>, transform_indices = @transform_4, window_bounds = array<i64: 16, 1>}, {pipeline_mode = #tpu.pipeline_mode<synchronous>, transform_indices = @transform_5, window_bounds = array<i64: 16, 16>}, {pipeline_mode = #tpu.pipeline_mode<synchronous>, transform_indices = @transform_6, window_bounds = array<i64: 16, 1>}, {pipeline_mode = #tpu.pipeline_mode<synchronous>, transform_indices = @transform_7, window_bounds = array<i64: 16, 1>}, {pipeline_mode = #tpu.pipeline_mode<synchronous>, transform_indices = @transform_8, window_bounds = array<i64: 1, 1>}, {transform_indices = @transform_9, window_bounds = array<i64: 1, 128>}]} {
    %c0 = arith.constant 0 : index
    %c0_0 = arith.constant 0 : index
    %0 = vector.load %arg1[%c0, %c0_0] : memref<1x128xf32, #tpu.memory_space<vmem>>, vector<1x128xf32>
    %c0_1 = arith.constant 0 : index
    %c0_2 = arith.constant 0 : index
    %1 = vector.load %arg2[%c0_1, %c0_2] : memref<16x1xf32, #tpu.memory_space<vmem>>, vector<16x1xf32>
    %2 = vector.broadcast %1 : vector<16x1xf32> to vector<16x128xf32>
    %3 = vector.broadcast %0 : vector<1x128xf32> to vector<16x128xf32>
    %4 = arith.mulf %2, %3 : vector<16x128xf32>
    %c0_3 = arith.constant 0 : index
    %c0_4 = arith.constant 0 : index
    %5 = vector.load %arg3[%c0_3, %c0_4] : memref<16x1xf32, #tpu.memory_space<vmem>>, vector<16x1xf32>
    %6 = vector.broadcast %5 : vector<16x1xf32> to vector<16x128xf32>
    %7 = arith.addf %4, %6 : vector<16x128xf32>
    %cst = arith.constant 0.000000e+00 : f32
    %8 = vector.broadcast %cst : f32 to vector<16x128xf32>
    %9 = arith.maximumf %7, %8 : vector<16x128xf32>
    %c0_5 = arith.constant 0 : index
    %c0_6 = arith.constant 0 : index
    %10 = vector.load %arg4[%c0_5, %c0_6] : memref<16x16xf32, #tpu.memory_space<vmem>>, vector<16x16xf32>
    %cst_7 = arith.constant dense<0.000000e+00> : vector<16x128xf32>
    %11 = tpu.matmul %10, %9, %cst_7 {dimension_numbers = #tpu.dot_dimension_numbers<[1], [0], [0], [1], [0, 0, 1, 1], [], []>} : vector<16x16xf32>, vector<16x128xf32>, vector<16x128xf32> -> vector<16x128xf32>
    %c0_8 = arith.constant 0 : index
    %c0_9 = arith.constant 0 : index
    %12 = vector.load %arg5[%c0_8, %c0_9] : memref<16x1xf32, #tpu.memory_space<vmem>>, vector<16x1xf32>
    %13 = vector.broadcast %12 : vector<16x1xf32> to vector<16x128xf32>
    %14 = arith.addf %11, %13 : vector<16x128xf32>
    %cst_10 = arith.constant 0.000000e+00 : f32
    %15 = vector.broadcast %cst_10 : f32 to vector<16x128xf32>
    %16 = arith.maximumf %14, %15 : vector<16x128xf32>
    %c0_11 = arith.constant 0 : index
    %c0_12 = arith.constant 0 : index
    %17 = vector.load %arg6[%c0_11, %c0_12] : memref<16x16xf32, #tpu.memory_space<vmem>>, vector<16x16xf32>
    %cst_13 = arith.constant dense<0.000000e+00> : vector<16x128xf32>
    %18 = tpu.matmul %17, %16, %cst_13 {dimension_numbers = #tpu.dot_dimension_numbers<[1], [0], [0], [1], [0, 0, 1, 1], [], []>} : vector<16x16xf32>, vector<16x128xf32>, vector<16x128xf32> -> vector<16x128xf32>
    %c0_14 = arith.constant 0 : index
    %c0_15 = arith.constant 0 : index
    %19 = vector.load %arg7[%c0_14, %c0_15] : memref<16x1xf32, #tpu.memory_space<vmem>>, vector<16x1xf32>
    %20 = vector.broadcast %19 : vector<16x1xf32> to vector<16x128xf32>
    %21 = arith.addf %18, %20 : vector<16x128xf32>
    %cst_16 = arith.constant 0.000000e+00 : f32
    %22 = vector.broadcast %cst_16 : f32 to vector<16x128xf32>
    %23 = arith.maximumf %21, %22 : vector<16x128xf32>
    %c0_17 = arith.constant 0 : index
    %c0_18 = arith.constant 0 : index
    %24 = vector.load %arg8[%c0_17, %c0_18] : memref<16x1xf32, #tpu.memory_space<vmem>>, vector<16x1xf32>
    %25 = vector.broadcast %24 : vector<16x1xf32> to vector<16x128xf32>
    %26 = arith.mulf %25, %23 : vector<16x128xf32>
    %cst_19 = arith.constant dense<0.000000e+00> : vector<128xf32>
    %27 = vector.multi_reduction <add>, %26, %cst_19 [0] : vector<16x128xf32> to vector<128xf32>
    %28 = vector.shape_cast %27 : vector<128xf32> to vector<1x128xf32>
    %c0_20 = arith.constant 0 : index
    %c0_21 = arith.constant 0 : index
    %29 = vector.load %arg9[%c0_20, %c0_21] : memref<1x1xf32, #tpu.memory_space<vmem>>, vector<1x1xf32>
    %30 = vector.broadcast %29 : vector<1x1xf32> to vector<1x128xf32>
    %31 = arith.addf %28, %30 : vector<1x128xf32>
    %c0_22 = arith.constant 0 : index
    %c0_23 = arith.constant 0 : index
    %32 = vector.load %arg10[%c0_22, %c0_23] : memref<1x128xf32, #tpu.memory_space<vmem>>, vector<1x128xf32>
    tpu.vector_store %arg10[%c0_22, %c0_23], %31 {strides = array<i32>} : memref<1x128xf32, #tpu.memory_space<vmem>>, vector<1x128xf32>,
    return
  }
  func.func @transform_0(%arg0: i32) -> (i32, i32) {
    %c0_i32 = arith.constant 0 : i32
    %c0_i32_0 = arith.constant 0 : i32
    return %c0_i32, %arg0 : i32, i32
  }
  func.func @transform_1(%arg0: i32) -> (i32, i32) {
    %c0_i32 = arith.constant 0 : i32
    %c0_i32_0 = arith.constant 0 : i32
    %c0_i32_1 = arith.constant 0 : i32
    return %c0_i32, %c0_i32_0 : i32, i32
  }
  func.func @transform_2(%arg0: i32) -> (i32, i32) {
    %c0_i32 = arith.constant 0 : i32
    %c0_i32_0 = arith.constant 0 : i32
    %c0_i32_1 = arith.constant 0 : i32
    return %c0_i32, %c0_i32_0 : i32, i32
  }
  func.func @transform_3(%arg0: i32) -> (i32, i32) {
    %c0_i32 = arith.constant 0 : i32
    %c0_i32_0 = arith.constant 0 : i32
    %c0_i32_1 = arith.constant 0 : i32
    return %c0_i32, %c0_i32_0 : i32, i32
  }
  func.func @transform_4(%arg0: i32) -> (i32, i32) {
    %c0_i32 = arith.constant 0 : i32
    %c0_i32_0 = arith.constant 0 : i32
    %c0_i32_1 = arith.constant 0 : i32
    return %c0_i32, %c0_i32_0 : i32, i32
  }
  func.func @transform_5(%arg0: i32) -> (i32, i32) {
    %c0_i32 = arith.constant 0 : i32
    %c0_i32_0 = arith.constant 0 : i32
    %c0_i32_1 = arith.constant 0 : i32
    return %c0_i32, %c0_i32_0 : i32, i32
  }
  func.func @transform_6(%arg0: i32) -> (i32, i32) {
    %c0_i32 = arith.constant 0 : i32
    %c0_i32_0 = arith.constant 0 : i32
    %c0_i32_1 = arith.constant 0 : i32
    return %c0_i32, %c0_i32_0 : i32, i32
  }
  func.func @transform_7(%arg0: i32) -> (i32, i32) {
    %c0_i32 = arith.constant 0 : i32
    %c0_i32_0 = arith.constant 0 : i32
    %c0_i32_1 = arith.constant 0 : i32
    return %c0_i32, %c0_i32_0 : i32, i32
  }
  func.func @transform_8(%arg0: i32) -> (i32, i32) {
    %c0_i32 = arith.constant 0 : i32
    %c0_i32_0 = arith.constant 0 : i32
    %c0_i32_1 = arith.constant 0 : i32
    return %c0_i32, %c0_i32_0 : i32, i32
  }
  func.func @transform_9(%arg0: i32) -> (i32, i32) {
    %c0_i32 = arith.constant 0 : i32
    %c0_i32_0 = arith.constant 0 : i32
    return %c0_i32, %arg0 : i32, i32
  }
}

</mosaic_0001>

<llo_original>
// kernel: forward.1
$region0: #{forward.1}
  #allocation0 [shape = 'u32[]', space=smem, size = 0x4, offset = 0x4, fixed_abs, tag = 'smem constant byte address 0x4 - core index']
  #allocation1 [shape = 'u32[144,128]{1,0:T(1,128)}', space=vmem, size = 0x12000, scoped, tag = 'internal scratch']
  #allocation2 [shape = 'f32[1,1]{1,0:T(1,128)S(1)}', space=vmem, size = 0x200, scoped, tag = 'scoped memory for forward.1']
  %s0 = inlined_call_operand.vmem [shape: f32[1,128], index: 0, kind: input, shape index: {}]
  %s1 = inlined_call_operand.hbm [shape: f32[16,1], index: 1, kind: input, shape index: {}]
  %s2 = inlined_call_operand.hbm [shape: f32[16,1], index: 2, kind: input, shape index: {}]
  %s3 = inlined_call_operand.hbm [shape: f32[16,16], index: 3, kind: input, shape index: {}]
  %s4 = inlined_call_operand.hbm [shape: f32[16,1], index: 4, kind: input, shape index: {}]
  %s5 = inlined_call_operand.hbm [shape: f32[16,16], index: 5, kind: input, shape index: {}]
  %s6 = inlined_call_operand.vmem [shape: f32[16,1], index: 6, kind: input, shape index: {}]
  %s7 = inlined_call_operand.vmem [shape: f32[16,1], index: 7, kind: input, shape index: {}]
  %s8 = inlined_call_operand.<no memory space> [shape: f32[1,1], index: 8, kind: input, shape index: {}]
  %s9 = inlined_call_operand.vmem [shape: f32[1,128], index: 9, kind: output, shape index: {}]
  %s10 = sld [smem:[#allocation0]]
  $region66: #{forward.1} parent=0
    _
  %s12 = ssub.s32 1, %s10
  %s13 = scalar_select 0, %s12, %s10
  %v14 = vstv %s8
  %15 = vst [vmem:[#allocation2] sm:$0x1] %v14
  $region1: #{forward.1} parent=0
    #allocation3 [shape = 'u8[8192]{0}', space=vmem, size = 0x2000, scoped, tag = 'input window, operand 1, single buffered']
    #allocation4 [shape = 's32[1]{0}', space=sflag, size = 0x4, scoped, tag = 'scoped memory for forward.1']
    #allocation5 [shape = 'u8[8192]{0}', space=vmem, size = 0x2000, scoped, tag = 'input window, operand 2, single buffered']
    #allocation6 [shape = 's32[1]{0}', space=sflag, size = 0x4, scoped, tag = 'scoped memory for forward.1']
    #allocation7 [shape = 'u8[8192]{0}', space=vmem, size = 0x2000, scoped, tag = 'input window, operand 3, single buffered']
    #allocation8 [shape = 'u8[8192]{0}', space=vmem, size = 0x2000, scoped, tag = 'input window, operand 4, single buffered']
    #allocation9 [shape = 's32[1]{0}', space=sflag, size = 0x4, scoped, tag = 'scoped memory for forward.1']
    #allocation10 [shape = 'u8[8192]{0}', space=vmem, size = 0x2000, scoped, tag = 'input window, operand 5, single buffered']
    %16 = vsyncpa [#allocation4], 0
    %17 = vsyncpa [#allocation6], 0
    %18 = vsyncpa [#allocation9], 0
    // Predicated region
    $region2: #{forward.1} parent=1 // pred_check
      _
    $region3: #{forward.1} parent=1 // pred_check_branch
      %20 = sbr.rel (0) target = $region5
    $region4: #{forward.1} parent=1 // pred_region
      _
    $region5: #{forward.1} parent=1 // pred_fallthru
      _
    // Predicated region
    $region6: #{forward.1} parent=1 // pred_check
      _
    $region7: #{forward.1} parent=1 // pred_check_branch
      %22 = sbr.rel (0) target = $region9
    $region8: #{forward.1} parent=1 // pred_region
      %s24 = ssub.s32 256, 256
      %25 = vsyncadd [#allocation4], %s24
      %s26 = sshll.u32 [#allocation3], 4
      %s27 = int_to_ptr.vmem [resolvable:$true] %s26
      %32 = dma.hbm_to_vmem [thread:$0]  %s1, 256, %s27, [#allocation4], 128, 128, 8
    $region9: #{forward.1} parent=1 // pred_fallthru
      _
    // Predicated region
    $region10: #{forward.1} parent=1 // pred_check
      _
    $region11: #{forward.1} parent=1 // pred_check_branch
      %34 = sbr.rel (0) target = $region13
    $region12: #{forward.1} parent=1 // pred_region
      %s36 = ssub.s32 256, 256
      %37 = vsyncadd [#allocation6], %s36
      %s38 = sshll.u32 [#allocation5], 4
      %s39 = int_to_ptr.vmem [resolvable:$true] %s38
      %44 = dma.hbm_to_vmem [thread:$0]  %s2, 256, %s39, [#allocation6], 128, 128, 8
    $region13: #{forward.1} parent=1 // pred_fallthru
      _
    // Predicated region
    $region14: #{forward.1} parent=1 // pred_check
      _
    $region15: #{forward.1} parent=1 // pred_check_branch
      %46 = sbr.rel (0) target = $region17
    $region16: #{forward.1} parent=1 // pred_region
      %s48 = ssub.s32 256, 256
      %49 = vsyncadd [#allocation6], %s48
      %s50 = sshll.u32 [#allocation7], 4
      %s51 = int_to_ptr.vmem [resolvable:$true] %s50
      %56 = dma.hbm_to_vmem [thread:$0]  %s3, 256, %s51, [#allocation6], 128, 128, 8
    $region17: #{forward.1} parent=1 // pred_fallthru
      _
    // Predicated region
    $region18: #{forward.1} parent=1 // pred_check
      _
    $region19: #{forward.1} parent=1 // pred_check_branch
      %58 = sbr.rel (0) target = $region21
    $region20: #{forward.1} parent=1 // pred_region
      %s60 = ssub.s32 256, 256
      %61 = vsyncadd [#allocation9], %s60
      %s62 = sshll.u32 [#allocation8], 4
      %s63 = int_to_ptr.vmem [resolvable:$true] %s62
      %68 = dma.hbm_to_vmem [thread:$0]  %s4, 256, %s63, [#allocation9], 128, 128, 8
    $region21: #{forward.1} parent=1 // pred_fallthru
      _
    // Predicated region
    $region22: #{forward.1} parent=1 // pred_check
      _
    $region23: #{forward.1} parent=1 // pred_check_branch
      %70 = sbr.rel (0) target = $region25
    $region24: #{forward.1} parent=1 // pred_region
      %s72 = ssub.s32 256, 256
      %73 = vsyncadd [#allocation9], %s72
      %s74 = sshll.u32 [#allocation10], 4
      %s75 = int_to_ptr.vmem [resolvable:$true] %s74
      %80 = dma.hbm_to_vmem [thread:$0]  %s5, 256, %s75, [#allocation9], 128, 128, 8
    $region25: #{forward.1} parent=1 // pred_fallthru
      _
    // Predicated region
    $region26: #{forward.1} parent=1 // pred_check
      _
    $region27: #{forward.1} parent=1 // pred_check_branch
      %82 = sbr.rel (0) target = $region29
    $region28: #{forward.1} parent=1 // pred_region
      _
    $region29: #{forward.1} parent=1 // pred_fallthru
      _
    // Predicated region
    $region30: #{forward.1} parent=1 // pred_check
      _
    $region31: #{forward.1} parent=1 // pred_check_branch
      %84 = sbr.rel (0) target = $region33
    $region32: #{forward.1} parent=1 // pred_region
      _
    $region33: #{forward.1} parent=1 // pred_fallthru
      _
    // Predicated region
    $region34: #{forward.1} parent=1 // pred_check
      _
    $region35: #{forward.1} parent=1 // pred_check_branch
      %86 = sbr.rel (0) target = $region37
    $region36: #{forward.1} parent=1 // pred_region
      _
    $region37: #{forward.1} parent=1 // pred_fallthru
      _
    // Predicated region
    $region38: #{forward.1} parent=1 // pred_check
      _
    $region39: #{forward.1} parent=1 // pred_check_branch
      %88 = sbr.rel (0) target = $region41
    $region40: #{forward.1} parent=1 // pred_region
      %89 = dma.done [#allocation4], 256
    $region41: #{forward.1} parent=1 // pred_fallthru
      _
    // Predicated region
    $region42: #{forward.1} parent=1 // pred_check
      _
    $region43: #{forward.1} parent=1 // pred_check_branch
      %91 = sbr.rel (0) target = $region45
    $region44: #{forward.1} parent=1 // pred_region
      %92 = dma.done [#allocation6], 256
    $region45: #{forward.1} parent=1 // pred_fallthru
      _
    // Predicated region
    $region46: #{forward.1} parent=1 // pred_check
      _
    $region47: #{forward.1} parent=1 // pred_check_branch
      %94 = sbr.rel (0) target = $region49
    $region48: #{forward.1} parent=1 // pred_region
      %95 = dma.done [#allocation6], 256
    $region49: #{forward.1} parent=1 // pred_fallthru
      _
    // Predicated region
    $region50: #{forward.1} parent=1 // pred_check
      _
    $region51: #{forward.1} parent=1 // pred_check_branch
      %97 = sbr.rel (0) target = $region53
    $region52: #{forward.1} parent=1 // pred_region
      %98 = dma.done [#allocation9], 256
    $region53: #{forward.1} parent=1 // pred_fallthru
      _
    // Predicated region
    $region54: #{forward.1} parent=1 // pred_check
      _
    $region55: #{forward.1} parent=1 // pred_check_branch
      %100 = sbr.rel (0) target = $region57
    $region56: #{forward.1} parent=1 // pred_region
      %101 = dma.done [#allocation9], 256
    $region57: #{forward.1} parent=1 // pred_fallthru
      _
    %v102 = vld [vmem:[%s0] sm:$0x1]
    %v103 = vld [vmem:[#allocation3] sm:$0xff]
    %v104 = vld [vmem:[#allocation3 + $0x8] sm:$0xff]
    %106 = vset.pattern.permute.xlu0 0
    %107 = vperm.xlu0 %106, %v103
    %v108 = vpop.permute.xlu0 %107
    %111 = vset.pattern.permute.xlu0 0
    %112 = vperm.xlu0 %111, %v104
    %v113 = vpop.permute.xlu0 %112
    %v116 = vlaneseq
    %v117 = vshrl.u32 %v116, 7
    %v118 = vsub.s32 0, %v117
    %v119 = vrot.slane %v102, %v118
    %v121 = vmul.f32 %v108, %v119
    %v122 = vmul.f32 %v113, %v119
    %v123 = vld [vmem:[#allocation5] sm:$0xff]
    %v124 = vld [vmem:[#allocation5 + $0x8] sm:$0xff]
    %126 = vset.pattern.permute.xlu0 0
    %127 = vperm.xlu0 %126, %v123
    %v128 = vpop.permute.xlu0 %127
    %131 = vset.pattern.permute.xlu0 0
    %132 = vperm.xlu0 %131, %v124
    %v133 = vpop.permute.xlu0 %132
    %v135 = vadd.f32 %v121, %v128
    %v136 = vadd.f32 %v122, %v133
    %v137 = vmax.f32 %v135, 0.0
    %v138 = vmax.f32 %v136, 0.0
    %v139 = vld [vmem:[#allocation7] sm:$0xff]
    %v140 = vld [vmem:[#allocation7 + $0x8] sm:$0xff]
    %v141 = vld [vmem:[#allocation8] sm:$0xff]
    %v142 = vld [vmem:[#allocation8 + $0x8] sm:$0xff]
    %144 = vset.pattern.permute.xlu0 0
    %145 = vperm.xlu0 %144, %v141
    %v146 = vpop.permute.xlu0 %145
    %149 = vset.pattern.permute.xlu0 0
    %150 = vperm.xlu0 %149, %v142
    %v151 = vpop.permute.xlu0 %150
    %vm153 = vcmask 130048
    %v155 = vsel %vm153, %v139, 0
    %v158 = vsel %vm153, %v140, 0
    %160 = vmatprep.subr.mxu0 0.0
    %161 = vmatpush1.msra.mxu0 %v137
    %162 = vmatprep.subr.mxu0 0.0
    %163 = vmatpush1.msra.mxu0 %v138
    %164 = vmatprep.subr.mxu0 0.0
    %165 = vmatpush1.msra.mxu0 0.0
    %166 = vmatprep.subr.mxu0 0.0
    %167 = vmatpush1.msra.mxu0 0.0
    %168 = vmatprep.subr.mxu0 0.0
    %169 = vmatpush1.msra.mxu0 0.0
    %170 = vmatprep.subr.mxu0 0.0
    %171 = vmatpush1.msra.mxu0 0.0
    %172 = vmatprep.subr.mxu0 0.0
    %173 = vmatpush1.msra.mxu0 0.0
    %174 = vmatprep.subr.mxu0 0.0
    %175 = vmatpush1.msra.mxu0 0.0
    %176 = vmatprep.subr.mxu0 0.0
    %177 = vmatpush1.msra.mxu0 0.0
    %178 = vmatprep.subr.mxu0 0.0
    %179 = vmatpush1.msra.mxu0 0.0
    %180 = vmatprep.subr.mxu0 0.0
    %181 = vmatpush1.msra.mxu0 0.0
    %182 = vmatprep.subr.mxu0 0.0
    %183 = vmatpush1.msra.mxu0 0.0
    %184 = vmatprep.subr.mxu0 0.0
    %185 = vmatpush1.msra.mxu0 0.0
    %186 = vmatprep.subr.mxu0 0.0
    %187 = vmatpush1.msra.mxu0 0.0
    %188 = vmatprep.subr.mxu0 0.0
    %189 = vmatpush1.msra.mxu0 0.0
    %190 = vmatprep.subr.mxu0 0.0
    %191 = vmatpush1.msra.mxu0 0.0
    %192 = vmatprep.subr.mxu0 0.0
    %193 = vmatpush1.msra.mxu0 0.0
    %194 = vmatprep.subr.mxu0 0.0
    %195 = vmatpush1.msra.mxu0 0.0
    %196 = vmatprep.subr.mxu0 0.0
    %197 = vmatpush1.msra.mxu0 0.0
    %198 = vmatprep.subr.mxu0 0.0
    %199 = vmatpush1.msra.mxu0 0.0
    %200 = vmatprep.subr.mxu0 0.0
    %201 = vmatpush1.msra.mxu0 0.0
    %202 = vmatprep.subr.mxu0 0.0
    %203 = vmatpush1.msra.mxu0 0.0
    %204 = vmatprep.subr.mxu0 0.0
    %205 = vmatpush1.msra.mxu0 0.0
    %206 = vmatprep.subr.mxu0 0.0
    %207 = vmatpush1.msra.mxu0 0.0
    %208 = vmatprep.subr.mxu0 0.0
    %209 = vmatpush1.msra.mxu0 0.0
    %210 = vmatprep.subr.mxu0 0.0
    %211 = vmatpush1.msra.mxu0 0.0
    %212 = vmatprep.subr.mxu0 0.0
    %213 = vmatpush1.msra.mxu0 0.0
    %214 = vmatprep.subr.mxu0 0.0
    %215 = vmatpush1.msra.mxu0 0.0
    %216 = vmatprep.subr.mxu0 0.0
    %217 = vmatpush1.msra.mxu0 0.0
    %218 = vmatprep.subr.mxu0 0.0
    %219 = vmatpush1.msra.mxu0 0.0
    %220 = vmatprep.subr.mxu0 0.0
    %221 = vmatpush1.msra.mxu0 0.0
    %222 = vmatprep.subr.mxu0 0.0
    %223 = vmatpush1.msra.mxu0 0.0
    %224 = vmatprep.mubr.f32.mxu0 0.0
    %225 = vmatmul.mubr.f32.gmra.mrb[0].mxu0 %v155
    %v226 = vpop.f32.mrb[0].mxu0
    %v227 = vadd.f32 %v146, %v226
    %v228 = vpop.f32.mrb[0].mxu0
    %229 = vmatprep.mubr.f32.mxu0 0.0
    %230 = vmatmul.mubr.f32.gmra.mrb[0].mxu0 %v158
    %v231 = vpop.f32.mrb[0].mxu0
    %v232 = vadd.f32 %v151, %v231
    %v233 = vpop.f32.mrb[0].mxu0
    %234 = vdwg.mxu0
    %v235 = vmax.f32 %v227, 0.0
    %v236 = vmax.f32 %v232, 0.0
    %v237 = vld [vmem:[#allocation10] sm:$0xff]
    %v238 = vld [vmem:[#allocation10 + $0x8] sm:$0xff]
    %v239 = vld [vmem:[%s6] sm:$0xff]
    %v240 = vld [vmem:[%s6 + $0x8] sm:$0xff]
    %242 = vset.pattern.permute.xlu0 0
    %243 = vperm.xlu0 %242, %v239
    %v244 = vpop.permute.xlu0 %243
    %247 = vset.pattern.permute.xlu0 0
    %248 = vperm.xlu0 %247, %v240
    %v249 = vpop.permute.xlu0 %248
    %v252 = vsel %vm153, %v237, 0
    %v255 = vsel %vm153, %v238, 0
    %257 = vmatprep.subr.mxu0 0.0
    %258 = vmatpush1.msra.mxu0 %v235
    %259 = vmatprep.subr.mxu0 0.0
    %260 = vmatpush1.msra.mxu0 %v236
    %261 = vmatprep.subr.mxu0 0.0
    %262 = vmatpush1.msra.mxu0 0.0
    %263 = vmatprep.subr.mxu0 0.0
    %264 = vmatpush1.msra.mxu0 0.0
    %265 = vmatprep.subr.mxu0 0.0
    %266 = vmatpush1.msra.mxu0 0.0
    %267 = vmatprep.subr.mxu0 0.0
    %268 = vmatpush1.msra.mxu0 0.0
    %269 = vmatprep.subr.mxu0 0.0
    %270 = vmatpush1.msra.mxu0 0.0
    %271 = vmatprep.subr.mxu0 0.0
    %272 = vmatpush1.msra.mxu0 0.0
    %273 = vmatprep.subr.mxu0 0.0
    %274 = vmatpush1.msra.mxu0 0.0
    %275 = vmatprep.subr.mxu0 0.0
    %276 = vmatpush1.msra.mxu0 0.0
    %277 = vmatprep.subr.mxu0 0.0
    %278 = vmatpush1.msra.mxu0 0.0
    %279 = vmatprep.subr.mxu0 0.0
    %280 = vmatpush1.msra.mxu0 0.0
    %281 = vmatprep.subr.mxu0 0.0
    %282 = vmatpush1.msra.mxu0 0.0
    %283 = vmatprep.subr.mxu0 0.0
    %284 = vmatpush1.msra.mxu0 0.0
    %285 = vmatprep.subr.mxu0 0.0
    %286 = vmatpush1.msra.mxu0 0.0
    %287 = vmatprep.subr.mxu0 0.0
    %288 = vmatpush1.msra.mxu0 0.0
    %289 = vmatprep.subr.mxu0 0.0
    %290 = vmatpush1.msra.mxu0 0.0
    %291 = vmatprep.subr.mxu0 0.0
    %292 = vmatpush1.msra.mxu0 0.0
    %293 = vmatprep.subr.mxu0 0.0
    %294 = vmatpush1.msra.mxu0 0.0
    %295 = vmatprep.subr.mxu0 0.0
    %296 = vmatpush1.msra.mxu0 0.0
    %297 = vmatprep.subr.mxu0 0.0
    %298 = vmatpush1.msra.mxu0 0.0
    %299 = vmatprep.subr.mxu0 0.0
    %300 = vmatpush1.msra.mxu0 0.0
    %301 = vmatprep.subr.mxu0 0.0
    %302 = vmatpush1.msra.mxu0 0.0
    %303 = vmatprep.subr.mxu0 0.0
    %304 = vmatpush1.msra.mxu0 0.0
    %305 = vmatprep.subr.mxu0 0.0
    %306 = vmatpush1.msra.mxu0 0.0
    %307 = vmatprep.subr.mxu0 0.0
    %308 = vmatpush1.msra.mxu0 0.0
    %309 = vmatprep.subr.mxu0 0.0
    %310 = vmatpush1.msra.mxu0 0.0
    %311 = vmatprep.subr.mxu0 0.0
    %312 = vmatpush1.msra.mxu0 0.0
    %313 = vmatprep.subr.mxu0 0.0
    %314 = vmatpush1.msra.mxu0 0.0
    %315 = vmatprep.subr.mxu0 0.0
    %316 = vmatpush1.msra.mxu0 0.0
    %317 = vmatprep.subr.mxu0 0.0
    %318 = vmatpush1.msra.mxu0 0.0
    %319 = vmatprep.subr.mxu0 0.0
    %320 = vmatpush1.msra.mxu0 0.0
    %321 = vmatprep.mubr.f32.mxu0 0.0
    %322 = vmatmul.mubr.f32.gmra.mrb[0].mxu0 %v252
    %v323 = vpop.f32.mrb[0].mxu0
    %v324 = vadd.f32 %v244, %v323
    %v325 = vpop.f32.mrb[0].mxu0
    %326 = vmatprep.mubr.f32.mxu0 0.0
    %327 = vmatmul.mubr.f32.gmra.mrb[0].mxu0 %v255
    %v328 = vpop.f32.mrb[0].mxu0
    %v329 = vadd.f32 %v249, %v328
    %v330 = vpop.f32.mrb[0].mxu0
    %331 = vdwg.mxu0
    %v332 = vmax.f32 %v324, 0.0
    %v333 = vmax.f32 %v329, 0.0
    %v334 = vld [vmem:[%s7] sm:$0xff]
    %v335 = vld [vmem:[%s7 + $0x8] sm:$0xff]
    %337 = vset.pattern.permute.xlu0 0
    %338 = vperm.xlu0 %337, %v334
    %v339 = vpop.permute.xlu0 %338
    %342 = vset.pattern.permute.xlu0 0
    %343 = vperm.xlu0 %342, %v335
    %v344 = vpop.permute.xlu0 %343
    %v346 = vmul.f32 %v339, %v332
    %v347 = vmul.f32 %v344, %v333
    %v348 = vadd.f32 %v346, %v347
    %v349 = vrot.slane %v348, 4
    %v350 = vadd.f32 %v348, %v349
    %v351 = vrot.slane %v350, 2
    %v352 = vadd.f32 %v350, %v351
    %v353 = vrot.slane %v352, 1
    %v354 = vadd.f32 %v352, %v353
    %v355 = vld [vmem:[#allocation2] sm:$0x1]
    %357 = vset.pattern.permute.xlu0 0
    %358 = vperm.xlu0 %357, %v355
    %v359 = vpop.permute.xlu0 %358
    %v361 = vlaneseq
    %v362 = vshrl.u32 %v361, 7
    %v363 = vsub.s32 0, %v362
    %v364 = vrot.slane %v359, %v363
    %v365 = vadd.f32 %v354, %v364
    %366 = vst [vmem:[%s9] sm:$0x1] %v365
    // Predicated region
    $region58: #{forward.1} parent=1 // pred_check
      _
    $region59: #{forward.1} parent=1 // pred_check_branch
      %368 = sbr.rel (0) target = $region61
    $region60: #{forward.1} parent=1 // pred_region
      _
    $region61: #{forward.1} parent=1 // pred_fallthru
      _
    // Predicated region
    $region62: #{forward.1} parent=1 // pred_check
      _
    $region63: #{forward.1} parent=1 // pred_check_branch
      %370 = sbr.rel (0) target = $region65
    $region64: #{forward.1} parent=1 // pred_region
      _
    $region65: #{forward.1} parent=1 // pred_fallthru
      _
    %371 = vsyncpa [#allocation4], 1
    %372 = vsyncpa [#allocation6], 1
    %373 = vsyncpa [#allocation9], 1

</llo_original>
